<compile_context>
chip_gen: v5e
topology: v5e:2x2
jax: 0.10.0
libtpu: 0.0.40
codegen_flags: <defaults>
</compile_context>

<pallas_src>
import functools

import jax
import jax.numpy as jnp
import numpy as np
from jax import lax
from jax.experimental import pallas as pl
from jax.experimental.pallas import tpu as pltpu


# ---------------------------------------------------------------------------
# Kernel
# ---------------------------------------------------------------------------
def _channel_attention_kernel(x_ref, w1t_ref, w2t_ref, out_ref, pool_ref, *,
                              hw_total, hw_tile, b_tile, inv_hw, ragged):
    # x_ref:    [b_tile, C, hw_tile]  current input tile (input dtype)
    # w1t_ref:  [C, Cr]               fc1 weight transposed (y = x @ W1^T)
    # w2t_ref:  [Cr, C]               fc2 weight transposed
    # out_ref:  [b_tile, 1, C]        sigmoid channel-attention scores
    # pool_ref: [2, b_tile, C] f32    [0] = running max, [1] = running sum
    s = pl.program_id(1)
    n_s = pl.num_programs(1)

    @pl.when(s == 0)
    def _init():
        pool_ref[0] = jnp.full(pool_ref.shape[1:], -jnp.inf, jnp.float32)
        pool_ref[1] = jnp.zeros(pool_ref.shape[1:], jnp.float32)

    x = x_ref[...]  # keep input dtype (bf16 ok); sum accumulates in f32

    def _accumulate(x_for_max, x_for_sum):
        tile_max = jnp.max(x_for_max, axis=-1).astype(jnp.float32)   # [b_tile, C]
        tile_sum = jnp.sum(x_for_sum, axis=-1, dtype=jnp.float32)    # [b_tile, C]
        pool_ref[0] = jnp.maximum(pool_ref[0], tile_max)
        pool_ref[1] = pool_ref[1] + tile_sum

    if ragged:
        # Only the last spatial tile is ragged: mask there, plain path elsewhere.
        @pl.when(s < n_s - 1)
        def _full_tile():
            _accumulate(x, x)

        @pl.when(s == n_s - 1)
        def _masked_tile():
            lane = lax.broadcasted_iota(jnp.int32, x.shape, dimension=2)
            valid = (s * hw_tile + lane) < hw_total
            neg_inf = jnp.array(-jnp.inf, dtype=x.dtype)   # float dtypes only
            zero = jnp.array(0, dtype=x.dtype)
            _accumulate(jnp.where(valid, x, neg_inf),
                        jnp.where(valid, x, zero))
    else:
        _accumulate(x, x)

    @pl.when(s == n_s - 1)
    def _finalize():
        max_pool = pool_ref[0]                         # [b_tile, C] f32
        avg_pool = pool_ref[1] * inv_hw                # divide once
        pooled = jnp.concatenate([max_pool, avg_pool], axis=0)   # [2*b_tile, C]

        w1t = w1t_ref[...].astype(jnp.float32)         # [C, Cr]
        w2t = w2t_ref[...].astype(jnp.float32)         # [Cr, C]

        # Fused shared-MLP: one fc1 matmul on the stacked pools; fc2 distributes
        # over the add, so only two MXU matmuls per batch tile.
        h = jnp.maximum(
            jnp.dot(pooled, w1t, preferred_element_type=jnp.float32), 0.0)
        h_sum = h[:b_tile] + h[b_tile:]                # [b_tile, Cr]
        y = jnp.dot(h_sum, w2t, preferred_element_type=jnp.float32)  # [b_tile, C]

        out_ref[...] = jax.nn.sigmoid(y).reshape(out_ref.shape).astype(
            out_ref.dtype)


# ---------------------------------------------------------------------------
# Tiling / budget helpers
# ---------------------------------------------------------------------------
def _vmem_capacity_bytes():
    """Physical VMEM per TensorCore; conservative fallback (v7x = 64 MiB)."""
    try:
        info = pltpu.get_tpu_info()
        for name in ("vmem_capacity_bytes", "vmem_bytes", "vmem_size_bytes"):
            cap = getattr(info, name, None)
            if cap:
                return int(cap)
    except Exception:
        pass
    return 64 << 20


def _largest_divisor_at_most(n, limit):
    limit = max(1, min(n, limit))
    for d in range(limit, 0, -1):
        if n % d == 0:
            return d
    return 1


def _choose_tiling(b, c, hw, itemsize, weight_resident_bytes):
    """Pick (b_tile, hw_tile) targeting 1-16 MiB per (double-buffered) x block."""
    cap = _vmem_capacity_bytes()
    usable = int(cap * 0.625)                  # ~40 MiB on v7x, ~80 MiB on v5e/v6e
    per_buf = (usable - weight_resident_bytes - (1 << 20)) // 2
    per_buf = max(1 << 20, min(per_buf, 16 << 20))

    row_bytes = c * hw * itemsize              # one full batch row
    if row_bytes > per_buf and hw > 128:
        # Big rows: one row per step, tile the spatial axis (multiple of 128).
        b_tile = 1
        lanes = max(128, per_buf // max(c * itemsize, 1))
        hw_tile = (min(lanes, hw) // 128) * 128
        if hw_tile <= 0 or hw_tile >= hw:
            hw_tile = hw
    else:
        # Small rows: take the whole spatial extent and pack multiple batch
        # rows per grid step (bigger DMAs, fewer ~600-cycle grid steps).
        hw_tile = hw
        rows = max(1, per_buf // max(row_bytes, 1))
        if b >= 2:
            # Keep >= 2 batch-grid steps so the "parallel" axis can be split
            # across both TensorCores on v7x.
            rows = min(rows, max(1, b // 2))
        b_tile = _largest_divisor_at_most(b, rows)
    return b_tile, hw_tile


# ---------------------------------------------------------------------------
# Wrapper
# ---------------------------------------------------------------------------
def channel_attention(x, fc1_w, fc2_w, *, b_tile=None, hw_tile=None,
                      interpret=False):
    """x: [B, C, H, W] (NCHW, like PyTorch), float dtype.
    fc1_w: [C//ratio, C]   (PyTorch Linear weight layout [out, in], no bias)
    fc2_w: [C, C//ratio]
    returns: [B, C, 1, 1] sigmoid channel-attention scores.
    """
    b, c, h, w = x.shape
    hw = h * w
    if not jnp.issubdtype(x.dtype, jnp.floating):
        raise ValueError("channel_attention kernel supports float inputs only "
                         "(ragged-tile masking uses -inf).")

    x_flat = x.reshape(b, c, hw)
    w1t = fc1_w.T                                    # [C, Cr]
    w2t = fc2_w.T                                    # [Cr, C]
    cr = fc1_w.shape[0]

    itemsize = x.dtype.itemsize
    w_itemsize = np.dtype(fc1_w.dtype).itemsize
    weight_bytes = 2 * c * cr * w_itemsize           # fc1 + fc2
    # Large weights: single-buffer them (constant index_map => one DMA anyway)
    # so residency doesn't crowd out the input double-buffer on v7x.
    single_buffer_weights = weight_bytes > (4 << 20)
    weight_resident = weight_bytes * (1 if single_buffer_weights else 2)

    auto_b_tile, auto_hw_tile = _choose_tiling(b, c, hw, itemsize,
                                               weight_resident)
    if b_tile is None:
        b_tile = auto_b_tile
    if hw_tile is None:
        hw_tile = auto_hw_tile

    if b % b_tile != 0:
        raise ValueError(f"b_tile={b_tile} must divide batch={b}")
    if hw_tile > hw:
        hw_tile = hw
    if hw_tile != hw and hw_tile % 128 != 0:
        raise ValueError(f"hw_tile={hw_tile} must be a multiple of 128 or "
                         f"equal to H*W={hw}")

    num_hw_steps = pl.cdiv(hw, hw_tile)
    ragged = (hw % hw_tile) != 0

    kernel = functools.partial(
        _channel_attention_kernel,
        hw_total=hw, hw_tile=hw_tile, b_tile=b_tile,
        inv_hw=float(1.0 / hw), ragged=ragged)

    w_spec_kwargs = {}
    if single_buffer_weights:
        w_spec_kwargs = dict(pipeline_mode=pl.Buffered(1))

    # Explicit, generation-aware VMEM limit from estimated residency.
    x_block_bytes = b_tile * c * hw_tile * itemsize
    scratch_bytes = 2 * b_tile * c * 4
    out_bytes = 2 * b_tile * c * itemsize
    resident = 2 * x_block_bytes + weight_resident + scratch_bytes + out_bytes
    cap = _vmem_capacity_bytes()
    vmem_limit = int(min(int(cap * 0.75),
                         max(32 << 20, 2 * resident + (8 << 20))))

    out = pl.pallas_call(
        kernel,
        out_shape=jax.ShapeDtypeStruct((b, 1, c), x.dtype),
        grid_spec=pltpu.PrefetchScalarGridSpec(
            num_scalar_prefetch=0,
            grid=(b // b_tile, num_hw_steps),          # batch parallel, HW last
            in_specs=[
                pl.BlockSpec((b_tile, c, hw_tile), lambda bi, si: (bi, 0, si)),
                pl.BlockSpec((c, cr), lambda bi, si: (0, 0), **w_spec_kwargs),
                pl.BlockSpec((cr, c), lambda bi, si: (0, 0), **w_spec_kwargs),
            ],
            out_specs=pl.BlockSpec((b_tile, 1, c), lambda bi, si: (bi, 0, 0)),
            scratch_shapes=[
                pltpu.VMEM((2, b_tile, c), jnp.float32),  # [max; sum] accum
            ],
        ),
        compiler_params=pltpu.CompilerParams(
            dimension_semantics=("parallel", "arbitrary"),
            vmem_limit_bytes=vmem_limit),
        interpret=interpret,
    )(x_flat, w1t, w2t)

    return out.reshape(b, c, 1, 1)


# ---------------------------------------------------------------------------
# Pure-JAX reference (mirrors the PyTorch forward) and self-test
# ---------------------------------------------------------------------------
def _reference(x, fc1_w, fc2_w):
    b, c, h, w = x.shape
    xf = x.reshape(b, c, h * w).astype(jnp.float32)
    max_pool = jnp.max(xf, axis=-1)
    avg_pool = jnp.mean(xf, axis=-1)
    w1 = fc1_w.astype(jnp.float32)
    w2 = fc2_w.astype(jnp.float32)
    hm = jax.nn.relu(max_pool @ w1.T)
    ha = jax.nn.relu(avg_pool @ w1.T)
    y = hm @ w2.T + ha @ w2.T
    return jax.nn.sigmoid(y).reshape(b, c, 1, 1)


if __name__ == "__main__":
    # Small shapes consistent with the module: C=8, ratio=4 -> Cr=2.
    C, ratio = 8, 4
    Cr = C // ratio

    key = jax.random.PRNGKey(0)
    kx1, kx2, kx3, k1, k2 = jax.random.split(key, 5)

    # Deterministic init mimicking nn.Linear (uniform +-1/sqrt(fan_in), no bias).
    bound1 = 1.0 / np.sqrt(C)
    bound2 = 1.0 / np.sqrt(Cr)
    fc1_w = jax.random.uniform(k1, (Cr, C), jnp.float32, -bound1, bound1)
    fc2_w = jax.random.uniform(k2, (C, Cr), jnp.float32, -bound2, bound2)

    # Case 1: B=2, H=W=16 (HW=256), forced hw_tile=128 -> exercises the
    # multi-step running max/sum accumulation + finalize branch.
    x1 = jax.random.normal(kx1, (2, C, 16, 16), dtype=jnp.float32)
    out1 = jax.block_until_ready(channel_attention(x1, fc1_w, fc2_w, hw_tile=128))
    ref1 = _reference(x1, fc1_w, fc2_w)
    assert out1.shape == (2, C, 1, 1)
    np.testing.assert_allclose(np.asarray(out1), np.asarray(ref1),
                               rtol=1e-5, atol=1e-5)

    # Case 2: B=2, H=W=20 (HW=400), hw_tile=128 -> ragged last tile, exercises
    # the last-step-only out-of-bounds lane masking.
    x2 = jax.random.normal(kx2, (2, C, 20, 20), dtype=jnp.float32)
    out2 = jax.block_until_ready(channel_attention(x2, fc1_w, fc2_w, hw_tile=128))
    ref2 = _reference(x2, fc1_w, fc2_w)
    np.testing.assert_allclose(np.asarray(out2), np.asarray(ref2),
                               rtol=1e-5, atol=1e-5)

    # Case 3: B=4, default tiling -> small rows, so multiple batch rows are
    # packed per grid step (b_tile=2) with the full spatial extent per block.
    x3 = jax.random.normal(kx3, (4, C, 16, 16), dtype=jnp.float32)
    out3 = jax.block_until_ready(channel_attention(x3, fc1_w, fc2_w))
    ref3 = _reference(x3, fc1_w, fc2_w)
    np.testing.assert_allclose(np.asarray(out3), np.asarray(ref3),
                               rtol=1e-5, atol=1e-5)

    # Case 4: default tile selection on case-1 input (whole spatial extent as
    # a single block, single reduction step).
    out4 = jax.block_until_ready(channel_attention(x1, fc1_w, fc2_w))
    np.testing.assert_allclose(np.asarray(out4), np.asarray(ref1),
                               rtol=1e-5, atol=1e-5)

    print("KERNEL_OK")
</pallas_src>

<mosaic_0001>
module attributes {stable_mosaic.version = 11 : i64} {
  func.func @_channel_attention_kernel(%arg0: i32, %arg1: i32, %arg2: memref<1x8x128xf32, #tpu.memory_space<vmem>>, %arg3: memref<8x2xf32, #tpu.memory_space<vmem>>, %arg4: memref<2x8xf32, #tpu.memory_space<vmem>>, %arg5: memref<1x1x8xf32, #tpu.memory_space<vmem>>, %arg6: memref<2x1x8xf32, #tpu.memory_space<vmem>>) attributes {dimension_semantics = [#tpu.dimension_semantics<parallel>, #tpu.dimension_semantics<arbitrary>], iteration_bounds = array<i64: 2, 2>, scalar_prefetch = 0 : i64, scratch_operands = 1 : i64, tpu.core_type = #tpu.core_type<tc>, window_params = [{transform_indices = @transform_0, window_bounds = array<i64: 1, 8, 128>}, {pipeline_mode = #tpu.pipeline_mode<synchronous>, transform_indices = @transform_1, window_bounds = array<i64: 8, 2>}, {pipeline_mode = #tpu.pipeline_mode<synchronous>, transform_indices = @transform_2, window_bounds = array<i64: 2, 8>}, {transform_indices = @transform_3, window_bounds = array<i64: 1, 1, 8>}]} {
    %c0_i32 = arith.constant 0 : i32
    %0 = arith.cmpi eq, %arg1, %c0_i32 : i32
    %1 = arith.extui %0 : i1 to i32
    %c0_i32_0 = arith.constant 0 : i32
    %2 = arith.cmpi ne, %1, %c0_i32_0 : i32
    scf.if %2 {
      %cst_16 = arith.constant 0xFF800000 : f32
      %21 = vector.broadcast %cst_16 : f32 to vector<1x8xf32>
      %c0_17 = arith.constant 0 : index
      %c0_18 = arith.constant 0 : index
      %c0_19 = arith.constant 0 : index
      %22 = vector.load %arg6[%c0_17, %c0_18, %c0_19] : memref<2x1x8xf32, #tpu.memory_space<vmem>>, vector<1x1x8xf32>
      %23 = vector.shape_cast %22 : vector<1x1x8xf32> to vector<1x8xf32>
      %24 = vector.shape_cast %21 : vector<1x8xf32> to vector<1x1x8xf32>
      tpu.vector_store %arg6[%c0_17, %c0_18, %c0_19], %24 {strides = array<i32>} : memref<2x1x8xf32, #tpu.memory_space<vmem>>, vector<1x1x8xf32>,
      %cst_20 = arith.constant 0.000000e+00 : f32
      %25 = vector.broadcast %cst_20 : f32 to vector<1x8xf32>
      %c1_21 = arith.constant 1 : index
      %c0_22 = arith.constant 0 : index
      %c0_23 = arith.constant 0 : index
      %26 = vector.load %arg6[%c1_21, %c0_22, %c0_23] : memref<2x1x8xf32, #tpu.memory_space<vmem>>, vector<1x1x8xf32>
      %27 = vector.shape_cast %26 : vector<1x1x8xf32> to vector<1x8xf32>
      %28 = vector.shape_cast %25 : vector<1x8xf32> to vector<1x1x8xf32>
      tpu.vector_store %arg6[%c1_21, %c0_22, %c0_23], %28 {strides = array<i32>} : memref<2x1x8xf32, #tpu.memory_space<vmem>>, vector<1x1x8xf32>,
    } else {
    }
    %c0 = arith.constant 0 : index
    %c0_1 = arith.constant 0 : index
    %c0_2 = arith.constant 0 : index
    %3 = vector.load %arg2[%c0, %c0_1, %c0_2] : memref<1x8x128xf32, #tpu.memory_space<vmem>>, vector<1x8x128xf32>
    %cst = arith.constant dense<0xFF800000> : vector<1x8xf32>
    %4 = vector.multi_reduction <maximumf>, %3, %cst [2] : vector<1x8x128xf32> to vector<1x8xf32>
    %cst_3 = arith.constant dense<0.000000e+00> : vector<1x8xf32>
    %5 = vector.multi_reduction <add>, %3, %cst_3 [2] : vector<1x8x128xf32> to vector<1x8xf32>
    %c0_4 = arith.constant 0 : index
    %c0_5 = arith.constant 0 : index
    %c0_6 = arith.constant 0 : index
    %6 = vector.load %arg6[%c0_4, %c0_5, %c0_6] : memref<2x1x8xf32, #tpu.memory_space<vmem>>, vector<1x1x8xf32>
    %7 = vector.shape_cast %6 : vector<1x1x8xf32> to vector<1x8xf32>
    %8 = arith.maximumf %7, %4 : vector<1x8xf32>
    %c0_7 = arith.constant 0 : index
    %c0_8 = arith.constant 0 : index
    %c0_9 = arith.constant 0 : index
    %9 = vector.load %arg6[%c0_7, %c0_8, %c0_9] : memref<2x1x8xf32, #tpu.memory_space<vmem>>, vector<1x1x8xf32>
    %10 = vector.shape_cast %9 : vector<1x1x8xf32> to vector<1x8xf32>
    %11 = vector.shape_cast %8 : vector<1x8xf32> to vector<1x1x8xf32>
    tpu.vector_store %arg6[%c0_7, %c0_8, %c0_9], %11 {strides = array<i32>} : memref<2x1x8xf32, #tpu.memory_space<vmem>>, vector<1x1x8xf32>,
    %c1 = arith.constant 1 : index
    %c0_10 = arith.constant 0 : index
    %c0_11 = arith.constant 0 : index
    %12 = vector.load %arg6[%c1, %c0_10, %c0_11] : memref<2x1x8xf32, #tpu.memory_space<vmem>>, vector<1x1x8xf32>
    %13 = vector.shape_cast %12 : vector<1x1x8xf32> to vector<1x8xf32>
    %14 = arith.addf %13, %5 : vector<1x8xf32>
    %c1_12 = arith.constant 1 : index
    %c0_13 = arith.constant 0 : index
    %c0_14 = arith.constant 0 : index
    %15 = vector.load %arg6[%c1_12, %c0_13, %c0_14] : memref<2x1x8xf32, #tpu.memory_space<vmem>>, vector<1x1x8xf32>
    %16 = vector.shape_cast %15 : vector<1x1x8xf32> to vector<1x8xf32>
    %17 = vector.shape_cast %14 : vector<1x8xf32> to vector<1x1x8xf32>
    tpu.vector_store %arg6[%c1_12, %c0_13, %c0_14], %17 {strides = array<i32>} : memref<2x1x8xf32, #tpu.memory_space<vmem>>, vector<1x1x8xf32>,
    %c1_i32 = arith.constant 1 : i32
    %18 = arith.cmpi eq, %arg1, %c1_i32 : i32
    %19 = arith.extui %18 : i1 to i32
    %c0_i32_15 = arith.constant 0 : i32
    %20 = arith.cmpi ne, %19, %c0_i32_15 : i32
    scf.if %20 {
      %c0_16 = arith.constant 0 : index
      %c0_17 = arith.constant 0 : index
      %c0_18 = arith.constant 0 : index
      %21 = vector.load %arg6[%c0_16, %c0_17, %c0_18] : memref<2x1x8xf32, #tpu.memory_space<vmem>>, vector<1x1x8xf32>
      %22 = vector.shape_cast %21 : vector<1x1x8xf32> to vector<1x8xf32>
      %c1_19 = arith.constant 1 : index
      %c0_20 = arith.constant 0 : index
      %c0_21 = arith.constant 0 : index
      %23 = vector.load %arg6[%c1_19, %c0_20, %c0_21] : memref<2x1x8xf32, #tpu.memory_space<vmem>>, vector<1x1x8xf32>
      %24 = vector.shape_cast %23 : vector<1x1x8xf32> to vector<1x8xf32>
      %cst_22 = arith.constant 3.906250e-03 : f32
      %25 = vector.broadcast %cst_22 : f32 to vector<1x8xf32>
      %26 = arith.mulf %24, %25 : vector<1x8xf32>
      %27 = tpu.concatenate %22, %26 in 0 : vector<1x8xf32>, vector<1x8xf32> -> vector<2x8xf32>
      %c0_23 = arith.constant 0 : index
      %c0_24 = arith.constant 0 : index
      %28 = vector.load %arg3[%c0_23, %c0_24] : memref<8x2xf32, #tpu.memory_space<vmem>>, vector<8x2xf32>
      %c0_25 = arith.constant 0 : index
      %c0_26 = arith.constant 0 : index
      %29 = vector.load %arg4[%c0_25, %c0_26] : memref<2x8xf32, #tpu.memory_space<vmem>>, vector<2x8xf32>
      %cst_27 = arith.constant dense<0.000000e+00> : vector<2x2xf32>
      %30 = tpu.matmul %27, %28, %cst_27 {dimension_numbers = #tpu.dot_dimension_numbers<[1], [0], [0], [1], [0, 0, 1, 1], [], []>} : vector<2x8xf32>, vector<8x2xf32>, vector<2x2xf32> -> vector<2x2xf32>
      %cst_28 = arith.constant 0.000000e+00 : f32
      %31 = vector.broadcast %cst_28 : f32 to vector<2x2xf32>
      %32 = arith.maximumf %30, %31 : vector<2x2xf32>
      %33 = vector.extract_strided_slice %32 {offsets = [0, 0], sizes = [1, 2], strides = [1, 1]} : vector<2x2xf32> to vector<1x2xf32>
      %34 = vector.extract_strided_slice %32 {offsets = [1, 0], sizes = [1, 2], strides = [1, 1]} : vector<2x2xf32> to vector<1x2xf32>
      %35 = arith.addf %33, %34 : vector<1x2xf32>
      %cst_29 = arith.constant dense<0.000000e+00> : vector<1x8xf32>
      %36 = tpu.matmul %35, %29, %cst_29 {dimension_numbers = #tpu.dot_dimension_numbers<[1], [0], [0], [1], [0, 0, 1, 1], [], []>} : vector<1x2xf32>, vector<2x8xf32>, vector<1x8xf32> -> vector<1x8xf32>
      %37 = arith.negf %36 : vector<1x8xf32>
      %38 = math.exp %37 : vector<1x8xf32>
      %cst_30 = arith.constant 1.000000e+00 : f32
      %39 = vector.broadcast %cst_30 : f32 to vector<1x8xf32>
      %40 = arith.addf %39, %38 : vector<1x8xf32>
      %41 = arith.divf %39, %40 : vector<1x8xf32>
      %42 = vector.shape_cast %41 : vector<1x8xf32> to vector<1x1x8xf32>
      %c0_31 = arith.constant 0 : index
      %c0_32 = arith.constant 0 : index
      %c0_33 = arith.constant 0 : index
      %43 = vector.load %arg5[%c0_31, %c0_32, %c0_33] : memref<1x1x8xf32, #tpu.memory_space<vmem>>, vector<1x1x8xf32>
      tpu.vector_store %arg5[%c0_31, %c0_32, %c0_33], %42 {strides = array<i32>} : memref<1x1x8xf32, #tpu.memory_space<vmem>>, vector<1x1x8xf32>,
    } else {
    }
    return
  }
  func.func @transform_0(%arg0: i32, %arg1: i32) -> (i32, i32, i32) {
    %c0_i32 = arith.constant 0 : i32
    %c0_i32_0 = arith.constant 0 : i32
    return %arg0, %c0_i32, %arg1 : i32, i32, i32
  }
  func.func @transform_1(%arg0: i32, %arg1: i32) -> (i32, i32) {
    %c0_i32 = arith.constant 0 : i32
    %c0_i32_0 = arith.constant 0 : i32
    %c0_i32_1 = arith.constant 0 : i32
    return %c0_i32, %c0_i32_0 : i32, i32
  }
  func.func @transform_2(%arg0: i32, %arg1: i32) -> (i32, i32) {
    %c0_i32 = arith.constant 0 : i32
    %c0_i32_0 = arith.constant 0 : i32
    %c0_i32_1 = arith.constant 0 : i32
    return %c0_i32, %c0_i32_0 : i32, i32
  }
  func.func @transform_3(%arg0: i32, %arg1: i32) -> (i32, i32, i32) {
    %c0_i32 = arith.constant 0 : i32
    %c0_i32_0 = arith.constant 0 : i32
    %c0_i32_1 = arith.constant 0 : i32
    return %arg0, %c0_i32, %c0_i32_0 : i32, i32, i32
  }
}

</mosaic_0001>

<llo_original>
// kernel: tpu_custom_call.1
$region0: #{tpu_custom_call.1}
  #allocation0 [shape = 'u32[]', space=smem, size = 0x4, offset = 0x4, fixed_abs, tag = 'smem constant byte address 0x4 - core index']
  #allocation1 [shape = 'u32[72,128]{1,0:T(1,128)}', space=vmem, size = 0x9000, scoped, tag = 'internal scratch']
  #allocation2 [shape = 'f32[2,1,8]{2,1,0:T(1,128)}', space=vmem, size = 0x400, scoped, tag = 'scratch operand']
  %s0 = inlined_call_operand.hbm [shape: f32[2,8,256], index: 0, kind: input, shape index: {}]
  %s1 = inlined_call_operand.vmem [shape: f32[8,2], index: 1, kind: input, shape index: {}]
  %s2 = inlined_call_operand.vmem [shape: f32[2,8], index: 2, kind: input, shape index: {}]
  %s3 = inlined_call_operand.hbm [shape: f32[2,1,8], index: 3, kind: output, shape index: {}]
  %s4 = sld [smem:[#allocation0]]
  $region57: #{tpu_custom_call.1} parent=0
    _
  %s6 = ssub.s32 1, %s4
  %s7 = scalar_select 0, %s6, %s4
  $region1: #{tpu_custom_call.1} parent=0
    #allocation3 [shape = 'u8[8192]{0}', space=vmem, size = 0x2000, scoped, tag = 'input window, operand 0']
    #allocation4 [shape = 's32[2]{0}', space=sflag, size = 0x8, scoped, tag = 'scoped memory for tpu_custom_call.1']
    #allocation5 [shape = 's32[2]{0}', space=sflag, size = 0x8, scoped, tag = 'scoped memory for tpu_custom_call.1']
    #allocation6 [shape = 'u8[1024]{0}', space=vmem, size = 0x400, scoped, tag = 'output window, operand 0']
    %8 = vsyncpa [#allocation4], 0
    %s9 = scalar_lea.sflag [#allocation4], 1
    %10 = vsyncpa %s9, 0
    %11 = vsyncpa [#allocation5], 0
    %s12 = scalar_lea.sflag [#allocation5], 1
    %13 = vsyncpa %s12, 0
    loop: start=0, step=1, limit=6
    $region2: #{tpu_custom_call.1} parent=1 // loop_pre_header
      _
    $region3: #{tpu_custom_call.1} parent=1 // loop_header
      %s15 = sphi 0, %s19
      %p16 = scmp.ge.s32.totalorder %s15, 6
      %s22 = sphi 0, %s34
      %s23 = sphi 0, %s30
      %s24 = sphi 0, %s22
      %s25 = sphi 0, %s23
      %s26 = sphi 0, %s24
      %s27 = sphi 0, %s25
      %s39 = sphi 0, %s41
      %s42 = sphi 0, %s39
      %s43 = sphi 0, %s42
      %s59 = sphi 0, %s43
      %s63 = sphi 0, %s63
      %s65 = sphi 0, %s63
      %s66 = sphi 0, %s65
      %s80 = sphi 0, %s66
      %s84 = sphi 0, %s84
      %s86 = sphi 0, %s84
      %s87 = sphi 0, %s86
      %s101 = sphi 0, %s87
      %s107 = sphi 0, %s109
      %s110 = sphi 0, %s107
      %s111 = sphi 0, %s110
      %s127 = sphi 0, %s111
    $region4: #{tpu_custom_call.1} parent=1 // loop_header_branch
      %18 = sbr.rel (%p16) target = $region8
    $region5: #{tpu_custom_call.1} parent=1 // loop_body
      %s20 = ssub.s32 %s15, 1
      %s21 = ssub.s32 %s15, 2
      %s28 = sadd.s32 1, %s23
      %p29 = scmp.ge.s32.totalorder %s28, 2
      %s30 = scalar_select %p29, 0, %s28
      %s31 = sadd.s32 1, %s22
      %s32 = scalar_select %p29, %s31, %s22
      %p33 = scmp.ge.s32.totalorder %s32, 2
      %s34 = scalar_select %p33, 0, %s32
      %s35 = ssub.s32 %s22, %s34
      %s36 = ssub.s32 %s23, %s30
      %s37 = sor.u32 %s35, %s36
      %p38 = scmp.eq.s32.totalorder %s37, 0
      %s40 = sadd.s32 %s39, 1
      %s41 = scalar_select %p38, %s39, %s40
      %p44 = pneg %p38
      %p45 = scmp.eq.s32.totalorder %s15, 3
      %p46 = por %p44, %p45
      %p47 = scmp.ne.s32.totalorder %s39, %s42
      %p48 = scmp.eq.s32.totalorder %s15, 0
      %p49 = por %p47, %p48
      %p50 = scmp.ne.s32.totalorder %s39, %s42
      %p51 = scmp.eq.s32.totalorder %s20, 3
      %p52 = por %p50, %p51
      %p53 = scmp.ne.s32.totalorder %s42, %s43
      %p54 = scmp.eq.s32.totalorder %s20, 0
      %p55 = por %p53, %p54
      %p56 = scmp.ne.s32.totalorder %s42, %s43
      %p57 = scmp.eq.s32.totalorder %s21, 3
      %p58 = por %p56, %p57
      %p60 = scmp.ne.s32.totalorder %s43, %s59
      %p61 = scmp.eq.s32.totalorder %s21, 0
      %p62 = por %p60, %p61
      %s64 = sadd.s32 %s63, 1
      %p67 = scmp.eq.s32.totalorder %s15, 3
      %p68 = scmp.ne.s32.totalorder %s63, %s65
      %p69 = scmp.eq.s32.totalorder %s15, 0
      %p70 = por %p68, %p69
      %p71 = scmp.ne.s32.totalorder %s63, %s65
      %p72 = scmp.eq.s32.totalorder %s20, 3
      %p73 = por %p71, %p72
      %p74 = scmp.ne.s32.totalorder %s65, %s66
      %p75 = scmp.eq.s32.totalorder %s20, 0
      %p76 = por %p74, %p75
      %p77 = scmp.ne.s32.totalorder %s65, %s66
      %p78 = scmp.eq.s32.totalorder %s21, 3
      %p79 = por %p77, %p78
      %p81 = scmp.ne.s32.totalorder %s66, %s80
      %p82 = scmp.eq.s32.totalorder %s21, 0
      %p83 = por %p81, %p82
      %s85 = sadd.s32 %s84, 1
      %p88 = scmp.eq.s32.totalorder %s15, 3
      %p89 = scmp.ne.s32.totalorder %s84, %s86
      %p90 = scmp.eq.s32.totalorder %s15, 0
      %p91 = por %p89, %p90
      %p92 = scmp.ne.s32.totalorder %s84, %s86
      %p93 = scmp.eq.s32.totalorder %s20, 3
      %p94 = por %p92, %p93
      %p95 = scmp.ne.s32.totalorder %s86, %s87
      %p96 = scmp.eq.s32.totalorder %s20, 0
      %p97 = por %p95, %p96
      %p98 = scmp.ne.s32.totalorder %s86, %s87
      %p99 = scmp.eq.s32.totalorder %s21, 3
      %p100 = por %p98, %p99
      %p102 = scmp.ne.s32.totalorder %s87, %s101
      %p103 = scmp.eq.s32.totalorder %s21, 0
      %p104 = por %p102, %p103
      %s105 = ssub.s32 %s22, %s34
      %p106 = scmp.eq.s32.totalorder %s105, 0
      %s108 = sadd.s32 %s107, 1
      %s109 = scalar_select %p106, %s107, %s108
      %p112 = pneg %p106
      %p113 = scmp.eq.s32.totalorder %s15, 3
      %p114 = por %p112, %p113
      %p115 = scmp.ne.s32.totalorder %s107, %s110
      %p116 = scmp.eq.s32.totalorder %s15, 0
      %p117 = por %p115, %p116
      %p118 = scmp.ne.s32.totalorder %s107, %s110
      %p119 = scmp.eq.s32.totalorder %s20, 3
      %p120 = por %p118, %p119
      %p121 = scmp.ne.s32.totalorder %s110, %s111
      %p122 = scmp.eq.s32.totalorder %s20, 0
      %p123 = por %p121, %p122
      %p124 = scmp.ne.s32.totalorder %s110, %s111
      %p125 = scmp.eq.s32.totalorder %s21, 3
      %p126 = por %p124, %p125
      %p128 = scmp.ne.s32.totalorder %s111, %s127
      %p129 = scmp.eq.s32.totalorder %s21, 0
      %p130 = por %p128, %p129
      %p131 = scmp.le.s32.totalorder 1, %s15
      %p132 = scmp.lt.s32.totalorder %s15, 5
      %p133 = pnand %p131, %p132
      %p134 = pneg %p133
      // Predicated region
      $region9: #{tpu_custom_call.1} parent=5 // pred_check
        _
      $region10: #{tpu_custom_call.1} parent=5 // pred_check_branch
        %136 = sbr.rel (%p133) target = $region12
      $region11: #{tpu_custom_call.1} parent=5 // pred_region
        %s137 = ssub.s32 %s15, 1
        // Predicated region
        $region13: #{tpu_custom_call.1} parent=11 // pred_check
          %p138 = pneg %p76
        $region14: #{tpu_custom_call.1} parent=11 // pred_check_branch
          %140 = sbr.rel (%p138) target = $region16
        $region15: #{tpu_custom_call.1} parent=11 // pred_region
          _
        $region16: #{tpu_custom_call.1} parent=11 // pred_fallthru
          _
        // Predicated region
        $region17: #{tpu_custom_call.1} parent=11 // pred_check
          %p141 = pneg %p97
        $region18: #{tpu_custom_call.1} parent=11 // pred_check_branch
          %143 = sbr.rel (%p141) target = $region20
        $region19: #{tpu_custom_call.1} parent=11 // pred_region
          _
        $region20: #{tpu_custom_call.1} parent=11 // pred_fallthru
          _
      $region12: #{tpu_custom_call.1} parent=5 // pred_fallthru
        _
      %p144 = scmp.lt.s32.totalorder %s15, 4
      // Predicated region
      $region21: #{tpu_custom_call.1} parent=5 // pred_check
        %p145 = pneg %p144
      $region22: #{tpu_custom_call.1} parent=5 // pred_check_branch
        %147 = sbr.rel (%p145) target = $region24
      $region23: #{tpu_custom_call.1} parent=5 // pred_region
        // Predicated region
        $region25: #{tpu_custom_call.1} parent=23 // pred_check
          %p148 = pneg %p49
        $region26: #{tpu_custom_call.1} parent=23 // pred_check_branch
          %150 = sbr.rel (%p148) target = $region28
        $region27: #{tpu_custom_call.1} parent=23 // pred_region
          %s151 = sand.u32 %s39, 1
          %s152 = scalar_lea.sflag [#allocation4], %s151
          %s153 = sand.u32 %s39, 1
          %s154 = smul.addr %s153, 8
          %s155 = scalar_lea.vmem [#allocation3], %s154
          %157 = vsyncadd %s152, 0
          %s158 = smul.addr %s22, 2
          %s159 = sadd.s32 %s23, %s158
          %s160 = smul.addr %s159, 8
          %s161 = scalar_lea.hbm %s0, %s160
          %s163 = sshll.u32 %s161, 4
          %s164 = int_to_ptr.hbm [resolvable:$true] %s163
          %s165 = sshll.u32 %s155, 4
          %s166 = int_to_ptr.vmem [resolvable:$true] %s165
          %168 = dma.hbm_to_vmem [thread:$0]  %s164, 128, %s166, %s152
        $region28: #{tpu_custom_call.1} parent=23 // pred_fallthru
          _
      $region24: #{tpu_custom_call.1} parent=5 // pred_fallthru
        _
      %p169 = scmp.le.s32.totalorder 1, %s15
      %p170 = scmp.lt.s32.totalorder %s15, 5
      %p171 = pnand %p169, %p170
      %p172 = pneg %p171
      // Predicated region
      $region29: #{tpu_custom_call.1} parent=5 // pred_check
        _
      $region30: #{tpu_custom_call.1} parent=5 // pred_check_branch
        %174 = sbr.rel (%p171) target = $region32
      $region31: #{tpu_custom_call.1} parent=5 // pred_region
        %s175 = ssub.s32 %s15, 1
        %s176 = sand.u32 %s42, 1
        %s177 = scalar_lea.sflag [#allocation4], %s176
        %s178 = sand.u32 %s42, 1
        %s179 = smul.addr %s178, 8
        %s180 = scalar_lea.vmem [#allocation3], %s179
        // Predicated region
        $region33: #{tpu_custom_call.1} parent=31 // pred_check
          %p181 = pneg %p55
        $region34: #{tpu_custom_call.1} parent=31 // pred_check_branch
          %183 = sbr.rel (%p181) target = $region36
        $region35: #{tpu_custom_call.1} parent=31 // pred_region
          %185 = dma.done %s177, 128
        $region36: #{tpu_custom_call.1} parent=31 // pred_fallthru
          _
        %s186 = sand.u32 %s42, 1
        %s187 = scalar_lea.sflag [#allocation4], %s186
        %s188 = sand.u32 %s42, 1
        %s189 = smul.addr %s188, 8
        %s190 = scalar_lea.vmem [#allocation3], %s189
        %p191 = pneg %p55
        %p192 = pneg %p52
        %p193 = pneg %p76
        %p194 = pneg %p73
        %p195 = pneg %p97
        %p196 = pneg %p94
        %p197 = pneg %p123
        %p198 = pneg %p120
        %s199 = sand.u32 %s110, 1
        %s200 = scalar_lea.sflag [#allocation5], %s199
        %s201 = sand.u32 %s110, 1
        %s202 = scalar_lea.vmem [#allocation6], %s201
        %p203 = scmp.eq.s32.totalorder %s25, 0
        // Predicated region
        $region37: #{tpu_custom_call.1} parent=31 // pred_check
          %p204 = pneg %p203
        $region38: #{tpu_custom_call.1} parent=31 // pred_check_branch
          %206 = sbr.rel (%p204) target = $region40
        $region39: #{tpu_custom_call.1} parent=31 // pred_region
          %vm207 = vcmask 57344
          %208 = vst.msk [vmem:[#allocation2] sm:$0x1] %vm207, -inf
          %s209 = scalar_lea.vmem [#allocation2], 1
          %210 = vst.msk [vmem:[%s209] sm:$0x1] %vm207, 0.0
        $region40: #{tpu_custom_call.1} parent=31 // pred_fallthru
          _
        %v211 = vld [vmem:[%s180] sm:$0xff]
        %212 = vmax.xlane.f32.xlu0 %v211
        %v213 = vpop.xlane.xlu0 %212
        %214 = vadd.xlane.f32.xlu0 %v211
        %v215 = vpop.xlane.xlu0 %214
        %v216 = vld [vmem:[#allocation2] sm:$0x1]
        %v218 = vperm.slane %v213, 0
        %v219 = vperm.slane %v213, 1
        %v220 = vperm.slane %v213, 2
        %v221 = vperm.slane %v213, 3
        %v222 = vperm.slane %v213, 4
        %v223 = vperm.slane %v213, 5
        %v224 = vperm.slane %v213, 6
        %v225 = vperm.slane %v213, 7
        %226 = vst [vmem:[#allocation1] ss:$9 sm:$0xff] %v218
        %s227 = scalar_lea.vmem [#allocation1], 1
        %228 = vst [vmem:[%s227] ss:$9 sm:$0xff] %v219
        %s229 = scalar_lea.vmem [#allocation1], 2
        %230 = vst [vmem:[%s229] ss:$9 sm:$0xff] %v220
        %s231 = scalar_lea.vmem [#allocation1], 3
        %232 = vst [vmem:[%s231] ss:$9 sm:$0xff] %v221
        %s233 = scalar_lea.vmem [#allocation1], 4
        %234 = vst [vmem:[%s233] ss:$9 sm:$0xff] %v222
        %s235 = scalar_lea.vmem [#allocation1], 5
        %236 = vst [vmem:[%s235] ss:$9 sm:$0xff] %v223
        %s237 = scalar_lea.vmem [#allocation1], 6
        %238 = vst [vmem:[%s237] ss:$9 sm:$0xff] %v224
        %s239 = scalar_lea.vmem [#allocation1], 7
        %240 = vst [vmem:[%s239] ss:$9 sm:$0xff] %v225
        %v241 = vld [vmem:[#allocation1] sm:$0xff]
        %242 = vset.pattern.permute.xlu0 0
        %243 = vperm.xlu0 %242, %v241
        %v244 = vpop.permute.xlu0 %243
        %v245 = vlaneseq
        %v246 = vand.u32 %v245, 127
        %v247 = vperm.slane %v244, %v246
        %v249 = vmax.f32 %v216, %v247
        %vm250 = vcmask 57344
        %251 = vst.msk [vmem:[#allocation2] sm:$0x1] %vm250, %v249
        %s252 = scalar_lea.vmem [#allocation2], 1
        %v253 = vld [vmem:[%s252] sm:$0x1]
        %v255 = vperm.slane %v215, 0
        %v256 = vperm.slane %v215, 1
        %v257 = vperm.slane %v215, 2
        %v258 = vperm.slane %v215, 3
        %v259 = vperm.slane %v215, 4
        %v260 = vperm.slane %v215, 5
        %v261 = vperm.slane %v215, 6
        %v262 = vperm.slane %v215, 7
        %263 = vst [vmem:[#allocation1] ss:$9 sm:$0xff] %v255
        %s264 = scalar_lea.vmem [#allocation1], 1
        %265 = vst [vmem:[%s264] ss:$9 sm:$0xff] %v256
        %s266 = scalar_lea.vmem [#allocation1], 2
        %267 = vst [vmem:[%s266] ss:$9 sm:$0xff] %v257
        %s268 = scalar_lea.vmem [#allocation1], 3
        %269 = vst [vmem:[%s268] ss:$9 sm:$0xff] %v258
        %s270 = scalar_lea.vmem [#allocation1], 4
        %271 = vst [vmem:[%s270] ss:$9 sm:$0xff] %v259
        %s272 = scalar_lea.vmem [#allocation1], 5
        %273 = vst [vmem:[%s272] ss:$9 sm:$0xff] %v260
        %s274 = scalar_lea.vmem [#allocation1], 6
        %275 = vst [vmem:[%s274] ss:$9 sm:$0xff] %v261
        %s276 = scalar_lea.vmem [#allocation1], 7
        %277 = vst [vmem:[%s276] ss:$9 sm:$0xff] %v262
        %v278 = vld [vmem:[#allocation1] sm:$0xff]
        %279 = vset.pattern.permute.xlu0 0
        %280 = vperm.xlu0 %279, %v278
        %v281 = vpop.permute.xlu0 %280
        %v282 = vperm.slane %v281, %v246
        %v284 = vadd.f32 %v253, %v282
        %285 = vst.msk [vmem:[%s252] sm:$0x1] %vm250, %v284
        %p286 = scmp.eq.s32.totalorder %s25, 1
        // Predicated region
        $region41: #{tpu_custom_call.1} parent=31 // pred_check
          %p287 = pneg %p286
        $region42: #{tpu_custom_call.1} parent=31 // pred_check_branch
          %289 = sbr.rel (%p287) target = $region44
        $region43: #{tpu_custom_call.1} parent=31 // pred_region
          %v290 = vld [vmem:[#allocation2] sm:$0x1]
          %v291 = vld [vmem:[%s252] sm:$0x1]
          %v292 = vmul.f32 %v291, 0.00390625
          %v294 = vperm.slane %v292, 0
          %vm296 = vcmask 1040384
          %v297 = vsel %vm296, %v290, %v294
          %v298 = vld [vmem:[%s1] sm:$0xff]
          %v299 = vld [vmem:[%s2] sm:$0x3]
          %vm300 = vcmask 64512
          %v302 = vsel %vm300, %v297, 0
          %304 = vmatpush.msra.mxu0 0.0
          %305 = vmatpush.msra.mxu0 0.0
          %306 = vmatpush.msra.mxu0 0.0
          %307 = vmatpush.msra.mxu0 0.0
          %308 = vmatpush.msra.mxu0 0.0
          %309 = vmatpush.msra.mxu0 0.0
          %310 = vmatpush.msra.mxu0 0.0
          %311 = vmatpush.msra.mxu0 0.0
          %312 = vmatpush.msra.mxu0 0.0
          %313 = vmatpush.msra.mxu0 0.0
          %314 = vmatpush.msra.mxu0 0.0
          %315 = vmatpush.msra.mxu0 0.0
          %316 = vmatpush.msra.mxu0 0.0
          %317 = vmatpush.msra.mxu0 0.0
          %318 = vmatpush.msra.mxu0 0.0
          %319 = vmatpush.msra.mxu0 %v298
          %320 = vmatmul.f32.gmra.mxu0 %v302
          %v321 = vpop.f32.mrf.mxu0
          %v322 = vadd.f32 0.0, %v321
          %323 = vdwg.mxu0
          %v324 = vmax.f32 %v322, 0.0
          %v326 = vrot.slane %v324, 1
          %v328 = vadd.f32 %v324, %v326
          %vm329 = vcmask 15360
          %v331 = vsel %vm329, %v328, 0
          %vm333 = vcmask 1041408
          %v335 = vsel %vm333, %v299, 0
          %337 = vmatpush.msra.mxu0 0.0
          %338 = vmatpush.msra.mxu0 0.0
          %339 = vmatpush.msra.mxu0 0.0
          %340 = vmatpush.msra.mxu0 0.0
          %341 = vmatpush.msra.mxu0 0.0
          %342 = vmatpush.msra.mxu0 0.0
          %343 = vmatpush.msra.mxu0 0.0
          %344 = vmatpush.msra.mxu0 0.0
          %345 = vmatpush.msra.mxu0 0.0
          %346 = vmatpush.msra.mxu0 0.0
          %347 = vmatpush.msra.mxu0 0.0
          %348 = vmatpush.msra.mxu0 0.0
          %349 = vmatpush.msra.mxu0 0.0
          %350 = vmatpush.msra.mxu0 0.0
          %351 = vmatpush.msra.mxu0 0.0
          %352 = vmatpush.msra.mxu0 %v335
          %353 = vmatmul.f32.gmra.mxu0 %v331
          %v354 = vpop.f32.mrf.mxu0
          %v355 = vadd.f32 0.0, %v354
          %356 = vdwg.mxu0
          %v357 = vxor.u32 %v355, 2147483648
          %v358 = vmul.f32 %v357, 1.442695
          %v359 = vpow.pop %v358
          %v360 = vadd.f32 %v359, 1.0
          %v361 = vrcp.pop %v360
          %v362 = vmul.f32 %v360, %v361
          %v363 = vsub.f32 1.0, %v362
          %v364 = vmul.f32 %v361, %v363
          %v365 = vadd.f32 %v361, %v364
          %vm366 = vweird.f32 %v360
          %vm367 = vweird.f32 %v361
          %vm368 = vmor %vm366, %vm367
          %v369 = vsel %vm368, %v361, %v365
          %v370 = vand.u32 2147483647, %v360
          %vm371 = vcmp.eq.f32.partialorder %v370, 8.507059e+37
          %v372 = vand.u32 %v360, 2147483648
          %v373 = vor.u32 1.1754944e-38, %v372
          %v374 = vsel %vm371, %v373, %v369
          %v375 = vmul.f32 1.0, %v374
          %376 = vst.msk [vmem:[%s202] sm:$0x1] %vm250, %v375
        $region44: #{tpu_custom_call.1} parent=31 // pred_fallthru
          _
        %s377 = sand.u32 %s110, 1
        %s378 = scalar_lea.sflag [#allocation5], %s377
        %s379 = sand.u32 %s110, 1
        %s380 = scalar_lea.vmem [#allocation6], %s379
        // Predicated region
        $region45: #{tpu_custom_call.1} parent=31 // pred_check
          %p381 = pneg %p120
        $region46: #{tpu_custom_call.1} parent=31 // pred_check_branch
          %383 = sbr.rel (%p381) target = $region48
        $region47: #{tpu_custom_call.1} parent=31 // pred_region
          %385 = vsyncadd %s378, 0
          %s386 = scalar_lea.hbm %s3, %s24
          %s388 = sshll.u32 %s380, 4
          %s389 = int_to_ptr.vmem [resolvable:$true] %s388
          %s390 = sshll.u32 %s386, 4
          %s391 = int_to_ptr.hbm [resolvable:$true] %s390
          %393 = dma.vmem_to_hbm [thread:$0]  %s389, 16, %s391, %s378
        $region48: #{tpu_custom_call.1} parent=31 // pred_fallthru
          _
      $region32: #{tpu_custom_call.1} parent=5 // pred_fallthru
        _
      %p394 = scmp.le.s32.totalorder 2, %s15
      // Predicated region
      $region49: #{tpu_custom_call.1} parent=5 // pred_check
        %p395 = pneg %p394
      $region50: #{tpu_custom_call.1} parent=5 // pred_check_branch
        %397 = sbr.rel (%p395) target = $region52
      $region51: #{tpu_custom_call.1} parent=5 // pred_region
        %s398 = ssub.s32 %s15, 2
        // Predicated region
        $region53: #{tpu_custom_call.1} parent=51 // pred_check
          %p399 = pneg %p126
        $region54: #{tpu_custom_call.1} parent=51 // pred_check_branch
          %401 = sbr.rel (%p399) target = $region56
        $region55: #{tpu_custom_call.1} parent=51 // pred_region
          %s402 = sand.u32 %s111, 1
          %s403 = scalar_lea.sflag [#allocation5], %s402
          %s404 = sand.u32 %s111, 1
          %s405 = scalar_lea.vmem [#allocation6], %s404
          %407 = dma.done %s403, 16
        $region56: #{tpu_custom_call.1} parent=51 // pred_fallthru
          _
      $region52: #{tpu_custom_call.1} parent=5 // pred_fallthru
        _
    $region6: #{tpu_custom_call.1} parent=1 // loop_footer
      %s19 = sadd.s32 1, %s15
    $region7: #{tpu_custom_call.1} parent=1 // loop_footer_branch
      %14 = sbr.rel target = $region3
    $region8: #{tpu_custom_call.1} parent=1 // loop_exit
      _
    %408 = vsyncpa [#allocation4], 1
    %s409 = scalar_lea.sflag [#allocation4], 1
    %410 = vsyncpa %s409, 1
    %411 = vsyncpa [#allocation5], 1
    %s412 = scalar_lea.sflag [#allocation5], 1
    %413 = vsyncpa %s412, 1

</llo_original>
